<compile_context>
chip_gen: v7x
topology: tpu7x:2x2x1
jax: 0.10.0
libtpu: 0.0.40
codegen_flags: <defaults>
</compile_context>

<pallas_src>
import functools

import jax
import jax.numpy as jnp
from jax import lax
from jax.experimental import pallas as pl
from jax.experimental.pallas import tpu as pltpu


_LANES = (512, 256, 128)           # lane-dense last-dim candidates (widest first)
_FUSED_CHUNK_ELEMS = 128 * 1024    # ~512 KiB f32 per internal chunk in the fused kernel


def _round_up(a, b):
    return (a + b - 1) // b * b


def _sublane(itemsize):
    # Packed sub-32-bit dtypes need taller sublane-aligned tiles.
    return 8 if itemsize >= 4 else (16 if itemsize == 2 else 32)


def _chip_config():
    """Generation-aware limits: VMEM budget, fused-path cutoff, pipeline tile size."""
    vmem_phys = None
    try:
        info = pltpu.get_tpu_info()
        vmem_phys = getattr(info, "vmem_capacity_bytes", None)
    except Exception:
        vmem_phys = None
    if not vmem_phys:
        vmem_phys = 64 * 1024 * 1024          # conservative default (v7x-sized)
    if vmem_phys >= 100 * 1024 * 1024:
        # v5e / v6e: 128 MiB VMEM, single TensorCore per chip.  The fused path
        # moves 2N HBM bytes vs 3N for the two-pass path, so push its cutoff high.
        return dict(vmem_limit=96 * 1024 * 1024,
                    fused_cutoff=12 * 1024 * 1024,
                    block_bytes=2 * 1024 * 1024)
    # v7x-like: 64 MiB VMEM per TensorCore, 2 TCs/chip.  The gridless fused
    # kernel only sees one TC's HBM bandwidth, so keep it for small tensors and
    # let the dual-TC "parallel" two-pass path take over beyond that.
    return dict(vmem_limit=44 * 1024 * 1024,
                fused_cutoff=4 * 1024 * 1024,
                block_bytes=2 * 1024 * 1024)


def _fused_geometry(n):
    """Lane-dense (rows, C) view for the fused path; avoid host pad when possible."""
    for C in _LANES:
        if n % C == 0:
            return C, n // C, 0
    # numel not a multiple of 128: pad (rare for conv activations).
    C = 128
    rows = pl.cdiv(n, C)
    return C, rows, rows * C - n


def _two_pass_geometry(n, itemsize, block_bytes):
    """(C, rows, pad, TM, nb, nc) for the tiled two-pass path."""
    sub = _sublane(itemsize)
    choice = None
    for C in _LANES:                       # best: C divides n AND rows % sub == 0 (no pad)
        if n % C == 0 and (n // C) % sub == 0:
            choice = (C, n // C, 0)
            break
    if choice is None:
        for C in _LANES:                   # next: C divides n, pad rows up to sublane
            if n % C == 0:
                rows = _round_up(n // C, sub)
                choice = (C, rows, rows * C - n)
                break
    if choice is None:                     # last resort: full pad
        C = 128
        rows = _round_up(pl.cdiv(n, C), sub)
        choice = (C, rows, rows * C - n)
    C, rows, pad = choice

    # Row tile: a multiple of the sublane count that divides `rows`, close to
    # the per-step byte budget, preferring an even block count so the 2-way
    # "parallel" leading axis of the reduction engages both v7x TensorCores.
    tm_cap = max(sub, min(rows, (block_bytes // (C * itemsize)) // sub * sub))
    best = None
    best_even = None
    t = tm_cap
    while t >= sub:
        if rows % t == 0:
            if best is None:
                best = t
            if (rows // t) % 2 == 0:
                best_even = t
                break
        t -= sub
    tm = best_even if best_even is not None else best
    nb = rows // tm
    nc = 2 if (nb >= 2 and nb % 2 == 0) else 1
    return C, rows, pad, tm, nb, nc


# ---------------------------------------------------------------------------
# Kernels
# ---------------------------------------------------------------------------
def _lsq_fused_kernel(x_ref, o_ref, step_ref, *, num_bins, bias, n_valid,
                      chunk_rows, use_reciprocal):
    """Whole tensor resident in VMEM: |x| reduction + fake-quant, one HBM pass.

    The slab is processed in row chunks with an internal fori_loop so VMEM
    temporaries stay bounded (no whole-slab intermediates) at any fused size.
    """
    rows, C = x_ref.shape
    tm = chunk_rows
    nfull = rows // tm
    tail = rows - nfull * tm

    # ---- pass A: sum of |x| -------------------------------------------------
    if nfull > 0:
        def abs_body(k, acc):
            start = pl.multiple_of(k * tm, 8)
            a = jnp.abs(x_ref[pl.ds(start, tm), :].astype(jnp.float32))
            # Tile-aligned sublane split: (tm, C) -> (tm//8, 8, C) is a pure view.
            return acc + jnp.sum(a.reshape(tm // 8, 8, C), axis=0)
        acc = lax.fori_loop(0, nfull, abs_body, jnp.zeros((8, C), jnp.float32))
        abs_sum = jnp.sum(acc)
    else:
        abs_sum = jnp.float32(0.0)
    if tail > 0:
        at = jnp.abs(x_ref[pl.ds(nfull * tm, tail), :].astype(jnp.float32))
        abs_sum = abs_sum + jnp.sum(at)

    # step-size init (first forward call): 2 * mean(|x|) / sqrt(num_bins)
    step = 2.0 * (abs_sum / jnp.float32(n_valid)) / jnp.sqrt(jnp.float32(num_bins))
    scale = step + jnp.float32(1e-7)
    inv = (jnp.float32(1.0) / scale) if use_reciprocal else None

    # ---- pass B: fake-quant (data already in VMEM: no HBM re-read) -----------
    def quant(xk):
        xf = xk.astype(jnp.float32)
        t = (xf * inv if use_reciprocal else xf / scale) - jnp.float32(bias)
        vbar = jnp.round(jnp.clip(t, 0.0, float(num_bins)))
        return ((vbar + jnp.float32(bias)) * scale).astype(o_ref.dtype)

    if nfull > 0:
        def quant_body(k, carry):
            start = pl.multiple_of(k * tm, 8)
            o_ref[pl.ds(start, tm), :] = quant(x_ref[pl.ds(start, tm), :])
            return carry
        lax.fori_loop(0, nfull, quant_body, 0)
    if tail > 0:
        s0 = nfull * tm
        o_ref[pl.ds(s0, tail), :] = quant(x_ref[pl.ds(s0, tail), :])

    step_ref[0] = step          # scalar out through SMEM (no 1-lane masked vst)


def _abs_sum_kernel(x_ref, part_ref):
    """Tiled |x| partial-sum into a resident (8, C) f32 accumulator block."""
    @pl.when(pl.program_id(1) == 0)
    def _():
        part_ref[...] = jnp.zeros_like(part_ref)
    a = jnp.abs(x_ref[...].astype(jnp.float32))
    # Fold the (TM, C) tile into the (8, C) accumulator with plain VPU adds.
    # The leading split is tile-aligned (TM % 8 == 0) so the reshape is a view;
    # if a Mosaic dump ever shows a relayout copy here, replace with an unrolled
    # fori_loop of 8-row ref slices (perf-review note).
    part_ref[...] += jnp.sum(a.reshape(a.shape[0] // 8, 8, a.shape[1]), axis=0)


def _lsq_quant_kernel(step_ref, x_ref, o_ref, *, num_bins, bias, use_reciprocal):
    """Elementwise LSQ fake-quant; step_size delivered via scalar prefetch (SMEM)."""
    scale = step_ref[0] + jnp.float32(1e-7)
    xf = x_ref[...].astype(jnp.float32)
    if use_reciprocal:
        t = xf * (jnp.float32(1.0) / scale) - jnp.float32(bias)
    else:
        t = xf / scale - jnp.float32(bias)   # bit-faithful to the reference formulation
    vbar = jnp.round(jnp.clip(t, 0.0, float(num_bins)))
    o_ref[...] = ((vbar + jnp.float32(bias)) * scale).astype(o_ref.dtype)


# ---------------------------------------------------------------------------
# Wrapper
# ---------------------------------------------------------------------------
def lsq_per_tensor_forward(x, bits=4, symm=True, *, use_reciprocal=None,
                           max_fused_bytes=None, block_bytes=None):
    """LSQPerTensor forward (first call): returns (fake-quantized x, init step_size)."""
    num_bins = 2 ** bits - 1
    bias = -num_bins / 2.0 if symm else 0.0
    if use_reciprocal is None:
        # Reciprocal-multiply trims ~4-6 VALU ops/elem; it matters when the
        # element rate doubles (bf16).  Exact division is kept for f32 so
        # quantization-bin decisions stay bit-faithful to `x / scale`.
        use_reciprocal = (x.dtype != jnp.float32)

    cfg = _chip_config()
    vmem_limit = cfg["vmem_limit"]
    if max_fused_bytes is None:
        max_fused_bytes = cfg["fused_cutoff"]
    if block_bytes is None:
        block_bytes = cfg["block_bytes"]

    n = x.size
    itemsize = x.dtype.itemsize

    # TODO(synk): the module's host-side `if x.min()<0 and x.max()>0 and not symm:
    # print(...); exit(0)` guard has no in-kernel equivalent; callers use symm=True.

    if n * itemsize <= max_fused_bytes:
        # ---- Fused single-kernel path: one HBM read + one HBM write (2N bytes) ----
        C, rows, pad = _fused_geometry(n)
        flat = x.reshape(-1)
        if pad:
            flat = jnp.pad(flat, (0, pad))
        x2 = flat.reshape(rows, C)
        sub = _sublane(itemsize)
        chunk = (rows // sub) * sub
        if chunk == 0:
            chunk = sub
        chunk = min(chunk, max(sub, (_FUSED_CHUNK_ELEMS // C) // sub * sub))

        out2, step_arr = pl.pallas_call(
            functools.partial(_lsq_fused_kernel, num_bins=num_bins, bias=bias,
                              n_valid=n, chunk_rows=chunk,
                              use_reciprocal=use_reciprocal),
            out_shape=(jax.ShapeDtypeStruct((rows, C), x.dtype),
                       jax.ShapeDtypeStruct((1,), jnp.float32)),
            # Whole-array VMEM residency (no grid): no pipeline double-buffering,
            # so the fused path needs ~2x the slab, not ~4x.
            in_specs=[pl.BlockSpec(memory_space=pltpu.MemorySpace.VMEM)],
            out_specs=(pl.BlockSpec(memory_space=pltpu.MemorySpace.VMEM),
                       pl.BlockSpec(memory_space=pltpu.MemorySpace.SMEM)),
            compiler_params=pltpu.CompilerParams(vmem_limit_bytes=vmem_limit),
            cost_estimate=pl.CostEstimate(flops=10 * rows * C, transcendentals=1,
                                          bytes_accessed=2 * rows * C * itemsize + 4),
        )(x2)
        step_size = step_arr[0]
    else:
        # ---- Two-pass path (3N HBM bytes, pipelined, dual-TC friendly) --------
        C, rows, pad, TM, nb, nc = _two_pass_geometry(n, itemsize, block_bytes)
        flat = x.reshape(-1)
        if pad:
            flat = jnp.pad(flat, (0, pad))
        x2 = flat.reshape(rows, C)
        nbc = nb // nc

        # Pass 1: tiled |x| reduction into a resident (8, C) accumulator per
        # parallel core index (leading axis feeds both v7x TensorCores).
        partials = pl.pallas_call(
            _abs_sum_kernel,
            out_shape=jax.ShapeDtypeStruct((nc * 8, C), jnp.float32),
            grid_spec=pltpu.PrefetchScalarGridSpec(
                num_scalar_prefetch=0,
                grid=(nc, nbc),
                in_specs=[pl.BlockSpec((TM, C), lambda c, i: (c * nbc + i, 0))],
                out_specs=pl.BlockSpec((8, C), lambda c, i: (c, 0))),
            compiler_params=pltpu.CompilerParams(
                dimension_semantics=("parallel", "arbitrary"),
                vmem_limit_bytes=vmem_limit),
            cost_estimate=pl.CostEstimate(flops=2 * rows * C, transcendentals=0,
                                          bytes_accessed=rows * C * itemsize
                                          + nc * 8 * C * 4),
        )(x2)
        # Step-size finalized host-side from the tiny partials block and fed back
        # via scalar prefetch: keeps the returned step bit-identical to the one
        # used inside the quant kernel (folding it into pass 2 would save a few
        # µs of launch latency at the cost of that guarantee).
        abs_sum = jnp.sum(partials)
        step_size = 2.0 * (abs_sum / jnp.float32(n)) / jnp.sqrt(jnp.float32(num_bins))
        step_vec = jnp.reshape(step_size, (1,)).astype(jnp.float32)

        # Pass 2: elementwise fake-quant over ~2 MiB lane-dense tiles (default
        # double-buffering; deeper pipelining buys <2% at this tile size).
        out2 = pl.pallas_call(
            functools.partial(_lsq_quant_kernel, num_bins=num_bins, bias=bias,
                              use_reciprocal=use_reciprocal),
            out_shape=jax.ShapeDtypeStruct((rows, C), x.dtype),
            grid_spec=pltpu.PrefetchScalarGridSpec(
                num_scalar_prefetch=1,
                grid=(nb,),
                in_specs=[pl.BlockSpec((TM, C), lambda i, step: (i, 0))],
                out_specs=pl.BlockSpec((TM, C), lambda i, step: (i, 0))),
            compiler_params=pltpu.CompilerParams(
                dimension_semantics=("parallel",),
                vmem_limit_bytes=vmem_limit),
            cost_estimate=pl.CostEstimate(flops=7 * rows * C, transcendentals=0,
                                          bytes_accessed=2 * rows * C * itemsize + 4),
        )(step_vec, x2)

    out_flat = out2.reshape(-1)
    if pad:
        out_flat = out_flat[:n]
    return out_flat.reshape(x.shape), step_size


# ---------------------------------------------------------------------------
# Plain-JAX references mirroring the PyTorch forward (first call)
# ---------------------------------------------------------------------------
def _reference_step(x, bits):
    num_bins = 2 ** bits - 1
    return 2.0 * jnp.mean(jnp.abs(x)) / jnp.sqrt(jnp.float32(num_bins))


def _reference_quant(x, step_size, bits, symm):
    num_bins = 2 ** bits - 1
    bias = -num_bins / 2.0 if symm else 0.0
    scale = step_size + 1e-7
    t = x / scale - bias
    vbar = jnp.round(jnp.clip(t, 0.0, float(num_bins)))
    return (vbar + bias) * scale


if __name__ == "__main__":
    key = jax.random.PRNGKey(0)
    # NCHW activation, like the PyTorch module would see.
    x = jax.random.normal(key, (2, 4, 16, 16), dtype=jnp.float32)
    # Slightly larger activation to exercise the two-pass / dual-accumulator path.
    x_big = jax.random.normal(key, (8, 4, 32, 32), dtype=jnp.float32)

    # Default dispatch: fused single-kernel path (tensor fits well under VMEM).
    out_f, step_f = lsq_per_tensor_forward(x, bits=4, symm=True)
    # Forced two-pass path with tiny tiles: exercises the 2-way "parallel"
    # reduction grid, resident accumulators, and the scalar-prefetch quant pass.
    out_t, step_t = lsq_per_tensor_forward(x_big, bits=4, symm=True,
                                           max_fused_bytes=0,
                                           block_bytes=32 * 1024)
    # Reciprocal-multiply variant (default for bf16 inputs).
    out_r, step_r = lsq_per_tensor_forward(x, bits=4, symm=True,
                                           use_reciprocal=True)

    out_f, step_f, out_t, step_t, out_r, step_r = jax.block_until_ready(
        (out_f, step_f, out_t, step_t, out_r, step_r))

    assert out_f.shape == x.shape and out_f.dtype == x.dtype
    assert out_t.shape == x_big.shape and out_t.dtype == x_big.dtype
    assert jnp.allclose(step_f, _reference_step(x, 4), rtol=1e-5, atol=1e-8)
    assert jnp.allclose(step_t, _reference_step(x_big, 4), rtol=1e-5, atol=1e-8)
    assert jnp.allclose(step_r, _reference_step(x, 4), rtol=1e-5, atol=1e-8)
    # Elementwise checks use the kernel-computed step so benign ulp-level
    # reduction-order differences cannot flip a quantization bin spuriously.
    assert jnp.allclose(out_f, _reference_quant(x, step_f, 4, True),
                        rtol=1e-5, atol=1e-6)
    assert jnp.allclose(out_t, _reference_quant(x_big, step_t, 4, True),
                        rtol=1e-5, atol=1e-6)
    # The reciprocal-multiply path may legitimately move a value by at most one bin.
    assert jnp.max(jnp.abs(out_r - out_f)) <= 1.01 * (step_f + 1e-7)
    print("KERNEL_OK")
</pallas_src>

<mosaic_0001>
module attributes {stable_mosaic.version = 11 : i64} {
  func.func @_lsq_fused_kernel(%arg0: memref<4x512xf32, #tpu.memory_space<vmem>>, %arg1: memref<4x512xf32, #tpu.memory_space<vmem>>, %arg2: memref<1xf32, #tpu.memory_space<smem>>) attributes {dimension_semantics = [], scalar_prefetch = 0 : i64, scratch_operands = 0 : i64, tpu.core_type = #tpu.core_type<tc>} {
    %c0 = arith.constant 0 : index
    %c0_0 = arith.constant 0 : index
    %0 = vector.load %arg0[%c0, %c0_0] : memref<4x512xf32, #tpu.memory_space<vmem>>, vector<4x512xf32>
    %1 = math.absf %0 : vector<4x512xf32>
    %2 = vector.shape_cast %1 : vector<4x512xf32> to vector<1x4x512xf32>
    %cst = arith.constant dense<0.000000e+00> : vector<1xf32>
    %3 = vector.multi_reduction <add>, %2, %cst [1, 2] : vector<1x4x512xf32> to vector<1xf32>
    %4 = vector.shape_cast %3 : vector<1xf32> to vector<1x1x1xf32>
    %5 = vector.extract %4[0, 0, 0] : f32 from vector<1x1x1xf32>
    %cst_1 = arith.constant 0.000000e+00 : f32
    %6 = arith.addf %cst_1, %5 : f32
    %cst_2 = arith.constant 2.048000e+03 : f32
    %7 = arith.divf %6, %cst_2 : f32
    %cst_3 = arith.constant 2.000000e+00 : f32
    %8 = arith.mulf %cst_3, %7 : f32
    %cst_4 = arith.constant 1.500000e+01 : f32
    %9 = math.sqrt %cst_4 : f32
    %10 = arith.divf %8, %9 : f32
    %cst_5 = arith.constant 1.000000e-07 : f32
    %11 = arith.addf %10, %cst_5 : f32
    %c0_6 = arith.constant 0 : index
    %c0_7 = arith.constant 0 : index
    %12 = vector.load %arg0[%c0_6, %c0_7] : memref<4x512xf32, #tpu.memory_space<vmem>>, vector<4x512xf32>
    %13 = vector.broadcast %11 : f32 to vector<4x512xf32>
    %14 = arith.divf %12, %13 : vector<4x512xf32>
    %cst_8 = arith.constant -7.500000e+00 : f32
    %15 = vector.broadcast %cst_8 : f32 to vector<4x512xf32>
    %16 = arith.subf %14, %15 : vector<4x512xf32>
    %cst_9 = arith.constant 0.000000e+00 : f32
    %cst_10 = arith.constant 1.500000e+01 : f32
    %17 = vector.broadcast %cst_9 : f32 to vector<4x512xf32>
    %18 = arith.maximumf %17, %16 : vector<4x512xf32>
    %19 = vector.broadcast %cst_10 : f32 to vector<4x512xf32>
    %20 = arith.minimumf %19, %18 : vector<4x512xf32>
    %21 = math.roundeven %20 : vector<4x512xf32>
    %cst_11 = arith.constant -7.500000e+00 : f32
    %22 = vector.broadcast %cst_11 : f32 to vector<4x512xf32>
    %23 = arith.addf %21, %22 : vector<4x512xf32>
    %24 = vector.broadcast %11 : f32 to vector<4x512xf32>
    %25 = arith.mulf %23, %24 : vector<4x512xf32>
    %c0_12 = arith.constant 0 : index
    %c0_13 = arith.constant 0 : index
    %26 = vector.load %arg1[%c0_12, %c0_13] : memref<4x512xf32, #tpu.memory_space<vmem>>, vector<4x512xf32>
    tpu.vector_store %arg1[%c0_12, %c0_13], %25 {strides = array<i32>} : memref<4x512xf32, #tpu.memory_space<vmem>>, vector<4x512xf32>,
    %c0_14 = arith.constant 0 : index
    %27 = memref.load %arg2[%c0_14] : memref<1xf32, #tpu.memory_space<smem>>
    memref.store %10, %arg2[%c0_14] : memref<1xf32, #tpu.memory_space<smem>>
    return
  }
}

</mosaic_0001>

<llo_original>
// kernel: tpu_custom_call.1
$region0: #{tpu_custom_call.1}
  #allocation0 [shape = 'u32[]', space=smem, size = 0x4, offset = 0x4, fixed_abs, tag = 'smem constant byte address 0x4 - core index']
  #allocation1 [shape = 'u32[144,128]{1,0:T(1,128)}', space=vmem, size = 0x12000, scoped, tag = 'internal scratch']
  %s0 = inlined_call_operand.hbm [shape: f32[4,512], index: 0, kind: input, shape index: {}]
  %s1 = inlined_call_operand.hbm [shape: f32[4,512], index: 1, kind: output, shape index: {0}]
  %s2 = inlined_call_operand.hbm [shape: f32[1], index: 2, kind: output, shape index: {1}]
  %3 = xla_tuple %s1, %s2
  %s4 = sld [smem:[#allocation0]]
  $region26: #{tpu_custom_call.1} parent=0
    _
  %s6 = ssub.s32 1, %s4
  %s7 = scalar_select 0, %s6, %s4
  $region1: #{tpu_custom_call.1} parent=0
    #allocation2 [shape = 'u8[8192]{0}', space=vmem, size = 0x2000, scoped, tag = 'input window, operand 0, single buffered']
    #allocation3 [shape = 's32[1]{0}', space=sflag, size = 0x4, scoped, tag = 'scoped memory for tpu_custom_call.1']
    #allocation4 [shape = 's32[1]{0}', space=sflag, size = 0x4, scoped, tag = 'scoped memory for tpu_custom_call.1']
    #allocation5 [shape = 's32[1]{0}', space=sflag, size = 0x4, scoped, tag = 'scoped memory for tpu_custom_call.1']
    #allocation6 [shape = 'u8[8192]{0}', space=vmem, size = 0x2000, scoped, tag = 'output window, operand 0, single buffered']
    #allocation7 [shape = 'u8[512]{0}', space=smem, size = 0x200, scoped, tag = 'output window, operand 1, single buffered']
    %8 = vsyncpa [#allocation3], 0
    %9 = vsyncpa [#allocation4], 0
    %10 = vsyncpa [#allocation5], 0
    // Predicated region
    $region2: #{tpu_custom_call.1} parent=1 // pred_check
      _
    $region3: #{tpu_custom_call.1} parent=1 // pred_check_branch
      %12 = sbr.rel (0) target = $region5
    $region4: #{tpu_custom_call.1} parent=1 // pred_region
      %s14 = ssub.s32 256, 256
      %15 = vsyncadd [#allocation3], %s14
      %s17 = sshll.u32 [#allocation2], 4
      %s18 = int_to_ptr.vmem [resolvable:$true] %s17
      %20 = dma.hbm_to_vmem [thread:$0]  %s0, 256, %s18, [#allocation3]
    $region5: #{tpu_custom_call.1} parent=1 // pred_fallthru
      _
    // Predicated region
    $region6: #{tpu_custom_call.1} parent=1 // pred_check
      _
    $region7: #{tpu_custom_call.1} parent=1 // pred_check_branch
      %22 = sbr.rel (0) target = $region9
    $region8: #{tpu_custom_call.1} parent=1 // pred_region
      %23 = dma.done [#allocation3], 256
    $region9: #{tpu_custom_call.1} parent=1 // pred_fallthru
      _
    %v24 = vld [vmem:[#allocation2] sm:$0xff]
    %v25 = vld [vmem:[#allocation2 + $0x8] sm:$0xff]
    %v26 = vand.u32 2147483647, %v24
    %v27 = vand.u32 2147483647, %v25
    %v30 = vcombine.high %v26, %v26
    %v31 = vcombine.high %v27, %v27
    %vm34 = vcmask 1043456
    %v35 = vsel %vm34, %v26, 0.0
    %v36 = vsel %vm34, %v30, 0.0
    %v37 = vadd.f32 %v35, %v36
    %v38 = vsel %vm34, %v27, 0.0
    %v39 = vadd.f32 %v37, %v38
    %v40 = vsel %vm34, %v31, 0.0
    %v41 = vadd.f32 %v39, %v40
    %42 = vadd.xlane.f32.xlu0 %v41
    %v43 = vpop.xlane.xlu0 %42
    %v44 = vrot.slane %v43, 4
    %v45 = vadd.f32 %v43, %v44
    %v46 = vrot.slane %v45, 2
    %v47 = vadd.f32 %v45, %v46
    %v48 = vrot.slane %v47, 1
    %v49 = vadd.f32 %v47, %v48
    %s50 = vtos %v49
    %s51 = sadd.f32 %s50, 0.0
    %v52 = vrcp.pop 2048.0
    %s53 = vtos %v52
    %s54 = smul.f32 %s51, %s53
    %s55 = smul.f32 %s54, 2.0
    %v56 = vrcp.pop 3.8729835
    %s57 = vtos %v56
    %s58 = smul.f32 %s55, %s57
    %s59 = sadd.f32 %s58, 1e-07
    %v60 = vstv %s59
    %v61 = vrcp.pop %v60
    %v62 = vmul.f32 %v24, %v61
    %v63 = vmul.f32 %v25, %v61
    %v64 = vsub.f32 %v62, -7.5
    %v65 = vsub.f32 %v63, -7.5
    %v66 = vmax.f32 %v64, 0.0
    %v67 = vmax.f32 %v65, 0.0
    %v68 = vmin.f32 %v66, 15.0
    %v69 = vmin.f32 %v67, 15.0
    %v70 = vround.ne.pseudo %v68
    %v71 = vround.ne.pseudo %v69
    %v72 = vadd.f32 %v70, -7.5
    %v73 = vadd.f32 %v71, -7.5
    %v74 = vmul.f32 %v72, %v60
    %v75 = vmul.f32 %v73, %v60
    %76 = vst [vmem:[#allocation6] sm:$0xff] %v74
    %77 = vst [vmem:[#allocation6 + $0x8] sm:$0xff] %v75
    %s78 = scalar_lea.smem [#allocation7], 0
    %79 = sst [smem:[%s78]] %s58
    // Predicated region
    $region10: #{tpu_custom_call.1} parent=1 // pred_check
      _
    $region11: #{tpu_custom_call.1} parent=1 // pred_check_branch
      %81 = sbr.rel (0) target = $region13
    $region12: #{tpu_custom_call.1} parent=1 // pred_region
      %s83 = ssub.s32 256, 256
      %84 = vsyncadd [#allocation4], %s83
      %s86 = sshll.u32 [#allocation6], 4
      %s87 = int_to_ptr.vmem [resolvable:$true] %s86
      %89 = dma.vmem_to_hbm [thread:$0]  %s87, 256, %s1, [#allocation4]
    $region13: #{tpu_custom_call.1} parent=1 // pred_fallthru
      _
    // Predicated region
    $region14: #{tpu_custom_call.1} parent=1 // pred_check
      _
    $region15: #{tpu_custom_call.1} parent=1 // pred_check_branch
      %91 = sbr.rel (0) target = $region17
    $region16: #{tpu_custom_call.1} parent=1 // pred_region
      %s93 = ssub.s32 16, 16
      %94 = vsyncadd [#allocation5], %s93
      %97 = dma.smem_to_hbm [#allocation7], 16, %s2, [#allocation5]
    $region17: #{tpu_custom_call.1} parent=1 // pred_fallthru
      _
    // Predicated region
    $region18: #{tpu_custom_call.1} parent=1 // pred_check
      _
    $region19: #{tpu_custom_call.1} parent=1 // pred_check_branch
      %99 = sbr.rel (0) target = $region21
    $region20: #{tpu_custom_call.1} parent=1 // pred_region
      %100 = dma.done [#allocation4], 256
    $region21: #{tpu_custom_call.1} parent=1 // pred_fallthru
      _
    // Predicated region
    $region22: #{tpu_custom_call.1} parent=1 // pred_check
      _
    $region23: #{tpu_custom_call.1} parent=1 // pred_check_branch
      %102 = sbr.rel (0) target = $region25
    $region24: #{tpu_custom_call.1} parent=1 // pred_region
      %103 = dma.done [#allocation5], 16
    $region25: #{tpu_custom_call.1} parent=1 // pred_fallthru
      _
    %104 = sfence
    %105 = vsyncpa [#allocation3], 1
    %106 = vsyncpa [#allocation4], 1
    %107 = vsyncpa [#allocation5], 1

</llo_original>
